<compile_context>
chip_gen: v6e
topology: v6e:2x2x1
jax: 0.10.0
libtpu: 0.0.40
codegen_flags: <defaults>
</compile_context>

<pallas_src>
import jax
import jax.numpy as jnp
from jax import lax
from jax.experimental import pallas as pl
from jax.experimental.pallas import tpu as pltpu


def policy_kernel(x_ref, w1_ref, b1_ref, w2_ref, b2_ref, o_ref):
    # layer1 in the transposed domain: h = relu(W1 @ x^T + b1) -> [hidden, TB]
    # x_ref is the natural-layout [TB, obs] tile; contract obs on both sides.
    h = lax.dot_general(
        w1_ref[...], x_ref[...],
        dimension_numbers=(((1,), (1,)), ((), ())),
        preferred_element_type=jnp.float32,
    )
    h = jnp.maximum(h + b1_ref[...], 0.0)

    # layer2: logits = W2 @ h + b2 -> [act, TB]
    logits = jnp.dot(w2_ref[...], h, preferred_element_type=jnp.float32) + b2_ref[...]

    # softmax over the action axis (axis 0 here == torch dim=1 in [B, act]).
    m = jnp.max(logits, axis=0, keepdims=True)
    e = jnp.exp(logits - m)
    denom = jnp.sum(e, axis=0, keepdims=True)
    o_ref[...] = (e / denom).astype(o_ref.dtype)   # exact normalization


def _round_up(n, m):
    return ((n + m - 1) // m) * m


def policy_nn_forward(x, w1, b1, w2, b2, *, tb_max=16384):
    """x: [B, obs] f32.  Torch-layout params: w1 [16, obs], b1 [16], w2 [act, 16], b2 [act].

    Returns softmax probabilities [B, act] in f32.
    """
    B, obs = x.shape
    act, hidden = w2.shape

    # Batch tile: multiple of 128 (lane-dense output stores), large enough to
    # amortize per-step overhead, capped so the double-buffered f32 x tile
    # stays within ~8 MiB (safe under v5e's 16 MiB default scoped VMEM), and
    # sized for >= 2 grid steps when the batch allows (v7x megacore).
    vmem_tile_budget = 8 * 1024 * 1024                      # bytes, x tile x2 buffers
    tb_cap = max(128, (vmem_tile_budget // (2 * obs * 4)) // 128 * 128)
    tb = max(128, min(tb_max, tb_cap, _round_up(-(-B // 2), 128)))
    grid = (pl.cdiv(B, tb),)

    x_f = x.astype(jnp.float32)                             # [B, obs] natural layout
    w1_f = w1.astype(jnp.float32)                           # [hidden, obs]
    b1_c = b1.reshape(hidden, 1).astype(jnp.float32)        # [hidden, 1]
    w2_f = w2.astype(jnp.float32)                           # [act, hidden]
    b2_c = b2.reshape(act, 1).astype(jnp.float32)           # [act, 1]

    out_t = pl.pallas_call(
        policy_kernel,
        out_shape=jax.ShapeDtypeStruct((act, B), jnp.float32),
        grid=grid,
        in_specs=[
            pl.BlockSpec((tb, obs), lambda i: (i, 0)),      # x tile, natural layout
            pl.BlockSpec((hidden, obs), lambda i: (0, 0)),  # W1 (VMEM-resident)
            pl.BlockSpec((hidden, 1), lambda i: (0, 0)),    # b1
            pl.BlockSpec((act, hidden), lambda i: (0, 0)),  # W2
            pl.BlockSpec((act, 1), lambda i: (0, 0)),       # b2
        ],
        out_specs=pl.BlockSpec((act, tb), lambda i: (0, i)),  # lane-dense output tile
        compiler_params=pltpu.CompilerParams(
            dimension_semantics=("parallel",),
        ),
    )(x_f, w1_f, b1_c, w2_f, b2_c)

    # Back to the module's [B, act] layout (wrapper-side layout plumbing only).
    return jnp.transpose(out_t)


def init_params(key, obs_space, act_space, hidden=16):
    """PyTorch-style uniform(-1/sqrt(fan_in), 1/sqrt(fan_in)) init, torch [out, in] layout."""
    k1, k2, k3, k4 = jax.random.split(key, 4)
    bound1 = 1.0 / jnp.sqrt(jnp.float32(obs_space))
    bound2 = 1.0 / jnp.sqrt(jnp.float32(hidden))
    w1 = jax.random.uniform(k1, (hidden, obs_space), jnp.float32, -bound1, bound1)
    b1 = jax.random.uniform(k2, (hidden,), jnp.float32, -bound1, bound1)
    w2 = jax.random.uniform(k3, (act_space, hidden), jnp.float32, -bound2, bound2)
    b2 = jax.random.uniform(k4, (act_space,), jnp.float32, -bound2, bound2)
    return w1, b1, w2, b2


if __name__ == "__main__":
    obs_space = 32
    act_space = 4
    batch = 8

    key = jax.random.PRNGKey(0)
    kx, kp = jax.random.split(key)
    x = jax.random.normal(kx, (batch, obs_space), jnp.float32)
    w1, b1, w2, b2 = init_params(kp, obs_space, act_space)

    out = policy_nn_forward(x, w1, b1, w2, b2)
    jax.block_until_ready(out)

    # Pure f32 reference (same math as the PyTorch module).
    h_ref = jnp.maximum(
        jnp.dot(x, w1.T, precision=lax.Precision.HIGHEST) + b1, 0.0)
    logits_ref = jnp.dot(h_ref, w2.T, precision=lax.Precision.HIGHEST) + b2
    ref = jax.nn.softmax(logits_ref, axis=1)

    assert out.shape == (batch, act_space)
    max_err = jnp.max(jnp.abs(out - ref))
    assert jnp.allclose(out, ref, atol=2e-3, rtol=0), max_err
    assert jnp.allclose(jnp.sum(out, axis=1), 1.0, atol=1e-3), jnp.sum(out, axis=1)

    print("KERNEL_OK")
</pallas_src>

<mosaic_0001>
module attributes {stable_mosaic.version = 11 : i64} {
  func.func @policy_kernel(%arg0: i32, %arg1: memref<128x32xf32, #tpu.memory_space<vmem>>, %arg2: memref<16x32xf32, #tpu.memory_space<vmem>>, %arg3: memref<16x1xf32, #tpu.memory_space<vmem>>, %arg4: memref<4x16xf32, #tpu.memory_space<vmem>>, %arg5: memref<4x1xf32, #tpu.memory_space<vmem>>, %arg6: memref<4x128xf32, #tpu.memory_space<vmem>>) attributes {dimension_semantics = [#tpu.dimension_semantics<parallel>], iteration_bounds = array<i64: 1>, scalar_prefetch = 0 : i64, scratch_operands = 0 : i64, tpu.core_type = #tpu.core_type<tc>, window_params = [{transform_indices = @transform_0, window_bounds = array<i64: 128, 32>}, {pipeline_mode = #tpu.pipeline_mode<synchronous>, transform_indices = @transform_1, window_bounds = array<i64: 16, 32>}, {pipeline_mode = #tpu.pipeline_mode<synchronous>, transform_indices = @transform_2, window_bounds = array<i64: 16, 1>}, {pipeline_mode = #tpu.pipeline_mode<synchronous>, transform_indices = @transform_3, window_bounds = array<i64: 4, 16>}, {pipeline_mode = #tpu.pipeline_mode<synchronous>, transform_indices = @transform_4, window_bounds = array<i64: 4, 1>}, {transform_indices = @transform_5, window_bounds = array<i64: 4, 128>}]} {
    %c0 = arith.constant 0 : index
    %c0_0 = arith.constant 0 : index
    %0 = vector.load %arg2[%c0, %c0_0] : memref<16x32xf32, #tpu.memory_space<vmem>>, vector<16x32xf32>
    %c0_1 = arith.constant 0 : index
    %c0_2 = arith.constant 0 : index
    %1 = vector.load %arg1[%c0_1, %c0_2] : memref<128x32xf32, #tpu.memory_space<vmem>>, vector<128x32xf32>
    %cst = arith.constant dense<0.000000e+00> : vector<16x128xf32>
    %2 = tpu.matmul %0, %1, %cst {dimension_numbers = #tpu.dot_dimension_numbers<[1], [1], [0], [0], [0, 0, 1, 0], [], []>} : vector<16x32xf32>, vector<128x32xf32>, vector<16x128xf32> -> vector<16x128xf32>
    %c0_3 = arith.constant 0 : index
    %c0_4 = arith.constant 0 : index
    %3 = vector.load %arg3[%c0_3, %c0_4] : memref<16x1xf32, #tpu.memory_space<vmem>>, vector<16x1xf32>
    %4 = vector.broadcast %3 : vector<16x1xf32> to vector<16x128xf32>
    %5 = arith.addf %2, %4 : vector<16x128xf32>
    %cst_5 = arith.constant 0.000000e+00 : f32
    %6 = vector.broadcast %cst_5 : f32 to vector<16x128xf32>
    %7 = arith.maximumf %5, %6 : vector<16x128xf32>
    %c0_6 = arith.constant 0 : index
    %c0_7 = arith.constant 0 : index
    %8 = vector.load %arg4[%c0_6, %c0_7] : memref<4x16xf32, #tpu.memory_space<vmem>>, vector<4x16xf32>
    %cst_8 = arith.constant dense<0.000000e+00> : vector<4x128xf32>
    %9 = tpu.matmul %8, %7, %cst_8 {dimension_numbers = #tpu.dot_dimension_numbers<[1], [0], [0], [1], [0, 0, 1, 1], [], []>} : vector<4x16xf32>, vector<16x128xf32>, vector<4x128xf32> -> vector<4x128xf32>
    %c0_9 = arith.constant 0 : index
    %c0_10 = arith.constant 0 : index
    %10 = vector.load %arg5[%c0_9, %c0_10] : memref<4x1xf32, #tpu.memory_space<vmem>>, vector<4x1xf32>
    %11 = vector.broadcast %10 : vector<4x1xf32> to vector<4x128xf32>
    %12 = arith.addf %9, %11 : vector<4x128xf32>
    %cst_11 = arith.constant dense<0xFF800000> : vector<128xf32>
    %13 = vector.multi_reduction <maximumf>, %12, %cst_11 [0] : vector<4x128xf32> to vector<128xf32>
    %14 = vector.shape_cast %13 : vector<128xf32> to vector<1x128xf32>
    %15 = vector.broadcast %14 : vector<1x128xf32> to vector<4x128xf32>
    %16 = arith.subf %12, %15 : vector<4x128xf32>
    %17 = math.exp %16 : vector<4x128xf32>
    %cst_12 = arith.constant dense<0.000000e+00> : vector<128xf32>
    %18 = vector.multi_reduction <add>, %17, %cst_12 [0] : vector<4x128xf32> to vector<128xf32>
    %19 = vector.shape_cast %18 : vector<128xf32> to vector<1x128xf32>
    %20 = vector.broadcast %19 : vector<1x128xf32> to vector<4x128xf32>
    %21 = arith.divf %17, %20 : vector<4x128xf32>
    %c0_13 = arith.constant 0 : index
    %c0_14 = arith.constant 0 : index
    %22 = vector.load %arg6[%c0_13, %c0_14] : memref<4x128xf32, #tpu.memory_space<vmem>>, vector<4x128xf32>
    tpu.vector_store %arg6[%c0_13, %c0_14], %21 {strides = array<i32>} : memref<4x128xf32, #tpu.memory_space<vmem>>, vector<4x128xf32>,
    return
  }
  func.func @transform_0(%arg0: i32) -> (i32, i32) {
    %c0_i32 = arith.constant 0 : i32
    %c0_i32_0 = arith.constant 0 : i32
    return %arg0, %c0_i32 : i32, i32
  }
  func.func @transform_1(%arg0: i32) -> (i32, i32) {
    %c0_i32 = arith.constant 0 : i32
    %c0_i32_0 = arith.constant 0 : i32
    %c0_i32_1 = arith.constant 0 : i32
    return %c0_i32, %c0_i32_0 : i32, i32
  }
  func.func @transform_2(%arg0: i32) -> (i32, i32) {
    %c0_i32 = arith.constant 0 : i32
    %c0_i32_0 = arith.constant 0 : i32
    %c0_i32_1 = arith.constant 0 : i32
    return %c0_i32, %c0_i32_0 : i32, i32
  }
  func.func @transform_3(%arg0: i32) -> (i32, i32) {
    %c0_i32 = arith.constant 0 : i32
    %c0_i32_0 = arith.constant 0 : i32
    %c0_i32_1 = arith.constant 0 : i32
    return %c0_i32, %c0_i32_0 : i32, i32
  }
  func.func @transform_4(%arg0: i32) -> (i32, i32) {
    %c0_i32 = arith.constant 0 : i32
    %c0_i32_0 = arith.constant 0 : i32
    %c0_i32_1 = arith.constant 0 : i32
    return %c0_i32, %c0_i32_0 : i32, i32
  }
  func.func @transform_5(%arg0: i32) -> (i32, i32) {
    %c0_i32 = arith.constant 0 : i32
    %c0_i32_0 = arith.constant 0 : i32
    return %c0_i32, %arg0 : i32, i32
  }
}

</mosaic_0001>

<llo_original>
// kernel: tpu_custom_call.1
$region0: #{tpu_custom_call.1}
  #allocation0 [shape = 'u32[]', space=smem, size = 0x4, offset = 0x4, fixed_abs, tag = 'smem constant byte address 0x4 - core index']
  #allocation1 [shape = 'u32[144,128]{1,0:T(1,128)}', space=vmem, size = 0x12000, scoped, tag = 'internal scratch']
  %s0 = inlined_call_operand.hbm [shape: f32[8,32], index: 0, kind: input, shape index: {}]
  %s1 = inlined_call_operand.vmem [shape: f32[16,32], index: 1, kind: input, shape index: {}]
  %s2 = inlined_call_operand.vmem [shape: f32[16,1], index: 2, kind: input, shape index: {}]
  %s3 = inlined_call_operand.vmem [shape: f32[4,16], index: 3, kind: input, shape index: {}]
  %s4 = inlined_call_operand.vmem [shape: f32[4,1], index: 4, kind: input, shape index: {}]
  %s5 = inlined_call_operand.hbm [shape: f32[4,8], index: 5, kind: output, shape index: {}]
  %s6 = sld [smem:[#allocation0]]
  $region34: #{tpu_custom_call.1} parent=0
    _
  %s8 = ssub.s32 1, %s6
  %s9 = scalar_select 0, %s8, %s6
  $region1: #{tpu_custom_call.1} parent=0
    #allocation2 [shape = 'u8[65536]{0}', space=vmem, size = 0x10000, scoped, tag = 'input window, operand 0, single buffered']
    #allocation3 [shape = 's32[1]{0}', space=sflag, size = 0x4, scoped, tag = 'scoped memory for tpu_custom_call.1']
    #allocation4 [shape = 's32[1]{0}', space=sflag, size = 0x4, scoped, tag = 'scoped memory for tpu_custom_call.1']
    #allocation5 [shape = 'u8[2048]{0}', space=vmem, size = 0x800, scoped, tag = 'output window, operand 0, single buffered']
    %10 = vsyncpa [#allocation3], 0
    %11 = vsyncpa [#allocation4], 0
    // Predicated region
    $region2: #{tpu_custom_call.1} parent=1 // pred_check
      _
    $region3: #{tpu_custom_call.1} parent=1 // pred_check_branch
      %13 = sbr.rel (0) target = $region5
    $region4: #{tpu_custom_call.1} parent=1 // pred_region
      %s15 = ssub.s32 2048, 128
      %16 = vsyncadd [#allocation3], %s15
      %s17 = sshll.u32 [#allocation2], 4
      %s18 = int_to_ptr.vmem [resolvable:$true] %s17
      %23 = dma.hbm_to_vmem [thread:$0]  %s0, 128, %s18, [#allocation3], 128, 128, 8
    $region5: #{tpu_custom_call.1} parent=1 // pred_fallthru
      _
    // Predicated region
    $region6: #{tpu_custom_call.1} parent=1 // pred_check
      _
    $region7: #{tpu_custom_call.1} parent=1 // pred_check_branch
      %25 = sbr.rel (0) target = $region9
    $region8: #{tpu_custom_call.1} parent=1 // pred_region
      _
    $region9: #{tpu_custom_call.1} parent=1 // pred_fallthru
      _
    // Predicated region
    $region10: #{tpu_custom_call.1} parent=1 // pred_check
      _
    $region11: #{tpu_custom_call.1} parent=1 // pred_check_branch
      %27 = sbr.rel (0) target = $region13
    $region12: #{tpu_custom_call.1} parent=1 // pred_region
      _
    $region13: #{tpu_custom_call.1} parent=1 // pred_fallthru
      _
    // Predicated region
    $region14: #{tpu_custom_call.1} parent=1 // pred_check
      _
    $region15: #{tpu_custom_call.1} parent=1 // pred_check_branch
      %29 = sbr.rel (0) target = $region17
    $region16: #{tpu_custom_call.1} parent=1 // pred_region
      _
    $region17: #{tpu_custom_call.1} parent=1 // pred_fallthru
      _
    // Predicated region
    $region18: #{tpu_custom_call.1} parent=1 // pred_check
      _
    $region19: #{tpu_custom_call.1} parent=1 // pred_check_branch
      %31 = sbr.rel (0) target = $region21
    $region20: #{tpu_custom_call.1} parent=1 // pred_region
      _
    $region21: #{tpu_custom_call.1} parent=1 // pred_fallthru
      _
    // Predicated region
    $region22: #{tpu_custom_call.1} parent=1 // pred_check
      _
    $region23: #{tpu_custom_call.1} parent=1 // pred_check_branch
      %33 = sbr.rel (0) target = $region25
    $region24: #{tpu_custom_call.1} parent=1 // pred_region
      %34 = dma.done [#allocation3], 2048
    $region25: #{tpu_custom_call.1} parent=1 // pred_fallthru
      _
    %v35 = vld [vmem:[%s1] sm:$0xff]
    %v36 = vld [vmem:[%s1 + $0x8] sm:$0xff]
    %v37 = vld [vmem:[#allocation2] sm:$0xff]
    %v38 = vld [vmem:[#allocation2 + $0x8] sm:$0xff]
    %v39 = vld [vmem:[#allocation2 + $0x10] sm:$0xff]
    %v40 = vld [vmem:[#allocation2 + $0x18] sm:$0xff]
    %v41 = vld [vmem:[#allocation2 + $0x20] sm:$0xff]
    %v42 = vld [vmem:[#allocation2 + $0x28] sm:$0xff]
    %v43 = vld [vmem:[#allocation2 + $0x30] sm:$0xff]
    %v44 = vld [vmem:[#allocation2 + $0x38] sm:$0xff]
    %v45 = vld [vmem:[#allocation2 + $0x40] sm:$0xff]
    %v46 = vld [vmem:[#allocation2 + $0x48] sm:$0xff]
    %v47 = vld [vmem:[#allocation2 + $0x50] sm:$0xff]
    %v48 = vld [vmem:[#allocation2 + $0x58] sm:$0xff]
    %v49 = vld [vmem:[#allocation2 + $0x60] sm:$0xff]
    %v50 = vld [vmem:[#allocation2 + $0x68] sm:$0xff]
    %v51 = vld [vmem:[#allocation2 + $0x70] sm:$0xff]
    %v52 = vld [vmem:[#allocation2 + $0x78] sm:$0xff]
    %v53 = vld [vmem:[%s2] sm:$0xff]
    %v54 = vld [vmem:[%s2 + $0x8] sm:$0xff]
    %56 = vset.pattern.permute.xlu0 0
    %57 = vperm.xlu0 %56, %v53
    %v58 = vpop.permute.xlu0 %57
    %61 = vset.pattern.permute.xlu0 0
    %62 = vperm.xlu0 %61, %v54
    %v63 = vpop.permute.xlu0 %62
    %vm65 = vcmask 261120
    %v67 = vsel %vm65, %v35, 0
    %v70 = vsel %vm65, %v36, 0
    %v73 = vsel %vm65, %v37, 0
    %v76 = vsel %vm65, %v38, 0
    %v79 = vsel %vm65, %v39, 0
    %v82 = vsel %vm65, %v40, 0
    %v85 = vsel %vm65, %v41, 0
    %v88 = vsel %vm65, %v42, 0
    %v91 = vsel %vm65, %v43, 0
    %v94 = vsel %vm65, %v44, 0
    %v97 = vsel %vm65, %v45, 0
    %v100 = vsel %vm65, %v46, 0
    %v103 = vsel %vm65, %v47, 0
    %v106 = vsel %vm65, %v48, 0
    %v109 = vsel %vm65, %v49, 0
    %v112 = vsel %vm65, %v50, 0
    %v115 = vsel %vm65, %v51, 0
    %v118 = vsel %vm65, %v52, 0
    %120 = vmatprep.subr.mxu0 0.0
    %121 = vmatpush1.xpose.msra.mxu0 %v118
    %122 = vmatprep.subr.mxu0 0.0
    %123 = vmatpush1.xpose.msra.mxu0 %v115
    %124 = vmatprep.subr.mxu0 0.0
    %125 = vmatpush1.xpose.msra.mxu0 %v112
    %126 = vmatprep.subr.mxu0 0.0
    %127 = vmatpush1.xpose.msra.mxu0 %v109
    %128 = vmatprep.subr.mxu0 0.0
    %129 = vmatpush1.xpose.msra.mxu0 %v106
    %130 = vmatprep.subr.mxu0 0.0
    %131 = vmatpush1.xpose.msra.mxu0 %v103
    %132 = vmatprep.subr.mxu0 0.0
    %133 = vmatpush1.xpose.msra.mxu0 %v100
    %134 = vmatprep.subr.mxu0 0.0
    %135 = vmatpush1.xpose.msra.mxu0 %v97
    %136 = vmatprep.subr.mxu0 0.0
    %137 = vmatpush1.xpose.msra.mxu0 %v94
    %138 = vmatprep.subr.mxu0 0.0
    %139 = vmatpush1.xpose.msra.mxu0 %v91
    %140 = vmatprep.subr.mxu0 0.0
    %141 = vmatpush1.xpose.msra.mxu0 %v88
    %142 = vmatprep.subr.mxu0 0.0
    %143 = vmatpush1.xpose.msra.mxu0 %v85
    %144 = vmatprep.subr.mxu0 0.0
    %145 = vmatpush1.xpose.msra.mxu0 %v82
    %146 = vmatprep.subr.mxu0 0.0
    %147 = vmatpush1.xpose.msra.mxu0 %v79
    %148 = vmatprep.subr.mxu0 0.0
    %149 = vmatpush1.xpose.msra.mxu0 %v76
    %150 = vmatprep.subr.mxu0 0.0
    %151 = vmatpush1.xpose.msra.mxu0 %v73
    %152 = vmatprep.subr.mxu0 0.0
    %153 = vmatpush2.xpose.msra.mxu0 0.0
    %154 = vmatprep.subr.mxu0 0.0
    %155 = vmatpush2.xpose.msra.mxu0 0.0
    %156 = vmatprep.subr.mxu0 0.0
    %157 = vmatpush2.xpose.msra.mxu0 0.0
    %158 = vmatprep.subr.mxu0 0.0
    %159 = vmatpush2.xpose.msra.mxu0 0.0
    %160 = vmatprep.subr.mxu0 0.0
    %161 = vmatpush2.xpose.msra.mxu0 0.0
    %162 = vmatprep.subr.mxu0 0.0
    %163 = vmatpush2.xpose.msra.mxu0 0.0
    %164 = vmatprep.subr.mxu0 0.0
    %165 = vmatpush2.xpose.msra.mxu0 0.0
    %166 = vmatprep.subr.mxu0 0.0
    %167 = vmatpush2.xpose.msra.mxu0 0.0
    %168 = vmatprep.subr.mxu0 0.0
    %169 = vmatpush2.xpose.msra.mxu0 0.0
    %170 = vmatprep.subr.mxu0 0.0
    %171 = vmatpush2.xpose.msra.mxu0 0.0
    %172 = vmatprep.subr.mxu0 0.0
    %173 = vmatpush2.xpose.msra.mxu0 0.0
    %174 = vmatprep.subr.mxu0 0.0
    %175 = vmatpush2.xpose.msra.mxu0 0.0
    %176 = vmatprep.subr.mxu0 0.0
    %177 = vmatpush2.xpose.msra.mxu0 0.0
    %178 = vmatprep.subr.mxu0 0.0
    %179 = vmatpush2.xpose.msra.mxu0 0.0
    %180 = vmatprep.subr.mxu0 0.0
    %181 = vmatpush2.xpose.msra.mxu0 0.0
    %182 = vmatprep.subr.mxu0 0.0
    %183 = vmatpush2.xpose.msra.mxu0 0.0
    %184 = vmatprep.mubr.f32.mxu0 0.0
    %185 = vmatmul.mubr.f32.gmra.mxu0 %v67
    %v186 = vpop.f32.mrf.mxu0
    %v187 = vadd.f32 %v58, %v186
    %v188 = vpop.f32.mrf.mxu0
    %189 = vmatprep.mubr.f32.mxu0 0.0
    %190 = vmatmul.mubr.f32.gmra.mxu0 %v70
    %v191 = vpop.f32.mrf.mxu0
    %v192 = vadd.f32 %v63, %v191
    %v193 = vpop.f32.mrf.mxu0
    %194 = vdwg.mxu0
    %v195 = vmax.f32 %v187, 0.0
    %v196 = vmax.f32 %v192, 0.0
    %v197 = vld [vmem:[%s3] sm:$0xf]
    %v198 = vld [vmem:[%s4] sm:$0xf]
    %200 = vset.pattern.permute.xlu0 0
    %201 = vperm.xlu0 %200, %v198
    %v202 = vpop.permute.xlu0 %201
    %vm204 = vcmask 130048
    %v206 = vsel %vm204, %v197, 0
    %208 = vmatprep.subr.mxu0 0.0
    %209 = vmatpush1.msra.mxu0 0.0
    %210 = vmatprep.subr.mxu0 0.0
    %211 = vmatpush1.msra.mxu0 0.0
    %212 = vmatprep.subr.mxu0 0.0
    %213 = vmatpush1.msra.mxu0 0.0
    %214 = vmatprep.subr.mxu0 0.0
    %215 = vmatpush1.msra.mxu0 0.0
    %216 = vmatprep.subr.mxu0 0.0
    %217 = vmatpush1.msra.mxu0 0.0
    %218 = vmatprep.subr.mxu0 0.0
    %219 = vmatpush1.msra.mxu0 0.0
    %220 = vmatprep.subr.mxu0 0.0
    %221 = vmatpush1.msra.mxu0 0.0
    %222 = vmatprep.subr.mxu0 0.0
    %223 = vmatpush1.msra.mxu0 0.0
    %224 = vmatprep.subr.mxu0 0.0
    %225 = vmatpush1.msra.mxu0 0.0
    %226 = vmatprep.subr.mxu0 0.0
    %227 = vmatpush1.msra.mxu0 0.0
    %228 = vmatprep.subr.mxu0 0.0
    %229 = vmatpush1.msra.mxu0 0.0
    %230 = vmatprep.subr.mxu0 0.0
    %231 = vmatpush1.msra.mxu0 0.0
    %232 = vmatprep.subr.mxu0 0.0
    %233 = vmatpush1.msra.mxu0 0.0
    %234 = vmatprep.subr.mxu0 0.0
    %235 = vmatpush1.msra.mxu0 0.0
    %236 = vmatprep.subr.mxu0 0.0
    %237 = vmatpush1.msra.mxu0 %v196
    %238 = vmatprep.subr.mxu0 0.0
    %239 = vmatpush1.msra.mxu0 %v195
    %240 = vmatprep.subr.mxu0 0.0
    %241 = vmatpush2.msra.mxu0 0.0
    %242 = vmatprep.subr.mxu0 0.0
    %243 = vmatpush2.msra.mxu0 0.0
    %244 = vmatprep.subr.mxu0 0.0
    %245 = vmatpush2.msra.mxu0 0.0
    %246 = vmatprep.subr.mxu0 0.0
    %247 = vmatpush2.msra.mxu0 0.0
    %248 = vmatprep.subr.mxu0 0.0
    %249 = vmatpush2.msra.mxu0 0.0
    %250 = vmatprep.subr.mxu0 0.0
    %251 = vmatpush2.msra.mxu0 0.0
    %252 = vmatprep.subr.mxu0 0.0
    %253 = vmatpush2.msra.mxu0 0.0
    %254 = vmatprep.subr.mxu0 0.0
    %255 = vmatpush2.msra.mxu0 0.0
    %256 = vmatprep.subr.mxu0 0.0
    %257 = vmatpush2.msra.mxu0 0.0
    %258 = vmatprep.subr.mxu0 0.0
    %259 = vmatpush2.msra.mxu0 0.0
    %260 = vmatprep.subr.mxu0 0.0
    %261 = vmatpush2.msra.mxu0 0.0
    %262 = vmatprep.subr.mxu0 0.0
    %263 = vmatpush2.msra.mxu0 0.0
    %264 = vmatprep.subr.mxu0 0.0
    %265 = vmatpush2.msra.mxu0 0.0
    %266 = vmatprep.subr.mxu0 0.0
    %267 = vmatpush2.msra.mxu0 0.0
    %268 = vmatprep.subr.mxu0 0.0
    %269 = vmatpush2.msra.mxu0 0.0
    %270 = vmatprep.subr.mxu0 0.0
    %271 = vmatpush2.msra.mxu0 0.0
    %272 = vmatprep.mubr.f32.mxu0 0.0
    %273 = vmatmul.mubr.f32.gmra.mxu0 %v206
    %v274 = vpop.f32.mrf.mxu0
    %v275 = vadd.f32 %v202, %v274
    %v276 = vpop.f32.mrf.mxu0
    %277 = vdwg.mxu0
    %vm278 = vcmask 1043456
    %v279 = vsel %vm278, %v275, -inf
    %v280 = vrot.slane %v279, 4
    %v281 = vmax.f32 %v279, %v280
    %v282 = vrot.slane %v281, 2
    %v283 = vmax.f32 %v281, %v282
    %v284 = vrot.slane %v283, 1
    %v285 = vmax.f32 %v283, %v284
    %v286 = vsub.f32 %v275, %v285
    %v287 = vmul.f32 %v286, 1.442695
    %v288 = vpow.pop %v287
    %v289 = vsel %vm278, %v288, 0.0
    %v290 = vrot.slane %v289, 4
    %v291 = vadd.f32 %v289, %v290
    %v292 = vrot.slane %v291, 2
    %v293 = vadd.f32 %v291, %v292
    %v294 = vrot.slane %v293, 1
    %v295 = vadd.f32 %v293, %v294
    %v296 = vrcp.pop %v295
    %v297 = vmul.f32 %v288, %v296
    %298 = vst [vmem:[#allocation5] sm:$0xf] %v297
    // Predicated region
    $region26: #{tpu_custom_call.1} parent=1 // pred_check
      _
    $region27: #{tpu_custom_call.1} parent=1 // pred_check_branch
      %300 = sbr.rel (0) target = $region29
    $region28: #{tpu_custom_call.1} parent=1 // pred_region
      %s302 = ssub.s32 64, 64
      %303 = vsyncadd [#allocation4], %s302
      %s305 = sshll.u32 [#allocation5], 4
      %s306 = int_to_ptr.vmem [resolvable:$true] %s305
      %308 = dma.vmem_to_hbm [thread:$0]  %s306, 64, %s5, [#allocation4]
    $region29: #{tpu_custom_call.1} parent=1 // pred_fallthru
      _
    // Predicated region
    $region30: #{tpu_custom_call.1} parent=1 // pred_check
      _
    $region31: #{tpu_custom_call.1} parent=1 // pred_check_branch
      %310 = sbr.rel (0) target = $region33
    $region32: #{tpu_custom_call.1} parent=1 // pred_region
      %311 = dma.done [#allocation4], 64
    $region33: #{tpu_custom_call.1} parent=1 // pred_fallthru
      _
    %312 = vsyncpa [#allocation3], 1
    %313 = vsyncpa [#allocation4], 1

</llo_original>
